<compile_context>
chip_gen: v7x
topology: tpu7x:2x2x1
jax: 0.10.0
libtpu: 0.0.40
codegen_flags: <defaults>
</compile_context>

<pallas_src>
import functools

import jax
import jax.numpy as jnp
from jax import lax
from jax.experimental import pallas as pl
from jax.experimental.pallas import tpu as pltpu

BN_EPS = 1e-5
NORM_EPS = 1e-12          # F.normalize default eps
CLS_HIDDEN = 100
CLS_HIDDEN_PAD = 128      # lane-pad classifier hidden (100 -> 128); zero pad == identical math
LANE = 128

VMEM_SPEC = pl.BlockSpec(memory_space=pltpu.MemorySpace.VMEM)
SMEM_SPEC = pl.BlockSpec(memory_space=pltpu.MemorySpace.SMEM)


def _round_up(x, m):
    return ((x + m - 1) // m) * m


# ---------------------------------------------------------------------------
# in-kernel helpers (traced inline, no extra launches)
# ---------------------------------------------------------------------------
def _l2norm_rows(x):
    nrm = jnp.sqrt(jnp.sum(x * x, axis=1, keepdims=True))
    return x / jnp.maximum(nrm, NORM_EPS)


def _bce_from_probs(p, t):
    # torch F.binary_cross_entropy clamps log terms at -100
    ln_p = jnp.maximum(jnp.log(p), -100.0)
    ln_q = jnp.maximum(jnp.log(1.0 - p), -100.0)
    return -(t * ln_p + (1.0 - t) * ln_q)


# ---------------------------------------------------------------------------
# single fused forward kernel
# ---------------------------------------------------------------------------
def _fused_forward_kernel(*refs, prot_out_dims, drug_out_dims, p_dim, d_dim, e_dim):
    n_prot, n_drug = len(prot_out_dims), len(drug_out_dims)

    # ---- unpack refs (inputs..., outputs..., scratch) ----
    prot_ref, drug_ref, labels_ref, og_ref, g_ref, hg_ref = refs[:6]
    idx = 6
    prot_w = refs[idx:idx + n_prot]; idx += n_prot
    drug_w = refs[idx:idx + n_drug]; idx += n_drug
    w1_ref, vecs_ref, scalars_ref = refs[idx:idx + 3]; idx += 3
    logits_ref, loss_ref = refs[idx:idx + 2]
    cat_ref = refs[idx + 2]                               # VMEM scratch [B, K_pack]

    loss_weight = scalars_ref[0]                          # SMEM scalars
    b2 = scalars_ref[1]

    # ---- contrastive loss: scores = norm(src) @ norm(dst.T) ----
    src = og_ref[...]                                     # old_g_backbone [B, E]
    dst = hg_ref[...]                                     # h_g_out        [B, E]
    s = _l2norm_rows(src)                                 # F.normalize(src, dim=1)
    # F.normalize(dst.T, dim=1) == normalize each column of dst over the batch axis
    coln = jnp.sqrt(jnp.sum(dst * dst, axis=0, keepdims=True))
    dstn = dst / jnp.maximum(coln, NORM_EPS)
    scores = lax.dot_general(s, dstn, (((1,), (1,)), ((), ())),
                             preferred_element_type=jnp.float32)      # [B, B]
    p_sc = jax.nn.sigmoid(scores)
    bsz = scores.shape[0]
    row = lax.broadcasted_iota(jnp.int32, (bsz, bsz), 0)
    col = lax.broadcasted_iota(jnp.int32, (bsz, bsz), 1)
    eye = (row == col).astype(jnp.float32)
    c_bce = _bce_from_probs(p_sc, eye)
    c_loss = jnp.sum(jnp.sum(c_bce, axis=1, keepdims=True),
                     axis=0, keepdims=True) / float(bsz * bsz)        # (1, 1)

    # ---- protein / drug MLP stacks: relu(x @ w' + shift) ----
    # (Linear bias + BN(eval) folded: scale into w', remainder into shift; Dropout=eval)
    p = prot_ref[...]
    for i in range(n_prot):
        dout = prot_out_dims[i]
        shift = vecs_ref[i:i + 1, 0:dout]
        p = jnp.maximum(
            jnp.dot(p, prot_w[i][...], preferred_element_type=jnp.float32) + shift, 0.0)
    d = drug_ref[...]
    for i in range(n_drug):
        dout = drug_out_dims[i]
        shift = vecs_ref[n_prot + i:n_prot + i + 1, 0:dout]
        d = jnp.maximum(
            jnp.dot(d, drug_w[i][...], preferred_element_type=jnp.float32) + shift, 0.0)

    # ---- graph-embedding L2 norms (og_n reuses s computed above) ----
    og_n = s
    g_n = _l2norm_rows(g_ref[...])
    hg_n = _l2norm_rows(dst)

    # ---- packed concat: 128-lane-aligned segments in VMEM scratch ----
    seg_p = _round_up(p_dim, LANE)
    seg_d = _round_up(d_dim, LANE)
    seg_e = _round_up(e_dim, LANE)
    cat_ref[...] = jnp.zeros_like(cat_ref)
    cat_ref[:, 0:p_dim] = p
    cat_ref[:, seg_p:seg_p + d_dim] = d
    off = seg_p + seg_d
    cat_ref[:, off:off + e_dim] = og_n
    cat_ref[:, off + seg_e:off + seg_e + e_dim] = g_n
    cat_ref[:, off + 2 * seg_e:off + 2 * seg_e + e_dim] = hg_n

    # ---- classifier head: ONE K=K_pack matmul against zero-rowed packed w1 ----
    r_b1 = n_prot + n_drug
    b1 = vecs_ref[r_b1:r_b1 + 1, 0:CLS_HIDDEN_PAD]        # [1, 128]
    w2 = vecs_ref[r_b1 + 1:r_b1 + 2, 0:CLS_HIDDEN_PAD]    # [1, 128]

    h = jnp.dot(cat_ref[...], w1_ref[...], preferred_element_type=jnp.float32)
    h = jnp.maximum(h + b1, 0.0)                          # [B, 128] lane-dense

    # second cls layer (hidden -> 1): VPU multiply + lane reduction (no N=1 matmul)
    z = jnp.sum(h * w2, axis=1, keepdims=True) + b2       # [B, 1]
    prob = jax.nn.sigmoid(z)
    logits_ref[...] = prob                                # tiny masked store; B is small

    t = labels_ref[...]                                   # [B, 1]
    cls_bce = _bce_from_probs(prob, t)
    class_loss = jnp.sum(cls_bce, axis=0, keepdims=True) / float(prob.shape[0])  # (1,1)

    loss_ref[...] = class_loss + loss_weight * c_loss


# ---------------------------------------------------------------------------
# Parameter construction (deterministic, mirrors GraphClassifier._construct_DNN)
# ---------------------------------------------------------------------------
def _dense_init(key, din, dout):
    kw, kb = jax.random.split(key)
    bound = 1.0 / (din ** 0.5)
    w = jax.random.uniform(kw, (din, dout), jnp.float32, -bound, bound)
    b = jax.random.uniform(kb, (dout,), jnp.float32, -bound, bound)
    return w, b


def _make_mlp(key, dims):
    """Linear + BatchNorm1d(eval: PyTorch init stats) + Dropout(eval) + ReLU per step.
    BN scale is folded into the weight; the remaining affine term becomes `shift`."""
    layers = []
    keys = jax.random.split(key, max(len(dims) - 1, 1))
    for i in range(1, len(dims)):
        w, b = _dense_init(keys[i - 1], dims[i - 1], dims[i])
        gamma = jnp.ones((dims[i],), jnp.float32)
        beta = jnp.zeros((dims[i],), jnp.float32)
        running_mean = jnp.zeros((dims[i],), jnp.float32)
        running_var = jnp.ones((dims[i],), jnp.float32)
        scale = gamma / jnp.sqrt(running_var + BN_EPS)
        shift = (b - running_mean) * scale + beta
        layers.append({"w": w * scale[None, :], "shift": shift})
    return layers


def init_params(key, drug_dims, protein_dims, embed_dim):
    k_drug, k_prot, k_cls1, k_cls2 = jax.random.split(key, 4)
    p_last, d_last = protein_dims[-1], drug_dims[-1]
    cls_in = d_last + p_last + 3 * embed_dim
    w1, b1 = _dense_init(k_cls1, cls_in, CLS_HIDDEN)
    w2, b2 = _dense_init(k_cls2, CLS_HIDDEN, 1)

    # lane-pad classifier hidden 100 -> 128 (zero cols: relu(0)=0 and 0*w2=0)
    pad_h = CLS_HIDDEN_PAD - CLS_HIDDEN
    w1p = jnp.pad(w1, ((0, 0), (0, pad_h)))               # [cls_in, 128]
    b1p = jnp.pad(b1, (0, pad_h))                         # [128]
    w2_row = jnp.pad(w2[:, 0], (0, pad_h))                # [128]

    # host-pack w1 into one zero-rowed [K_pack, 128] weight (absorbs the concat,
    # with each input segment placed at a 128-lane-aligned row offset)
    seg_p = _round_up(p_last, LANE)
    seg_d = _round_up(d_last, LANE)
    seg_e = _round_up(embed_dim, LANE)
    k_pack = seg_p + seg_d + 3 * seg_e
    src_offs = [0, p_last, p_last + d_last, p_last + d_last + embed_dim,
                p_last + d_last + 2 * embed_dim, cls_in]
    dst_offs = [0, seg_p, seg_p + seg_d, seg_p + seg_d + seg_e,
                seg_p + seg_d + 2 * seg_e]
    w1_pack = jnp.zeros((k_pack, CLS_HIDDEN_PAD), jnp.float32)
    for i in range(5):
        blk = w1p[src_offs[i]:src_offs[i + 1], :]
        w1_pack = w1_pack.at[dst_offs[i]:dst_offs[i] + blk.shape[0], :].set(blk)

    prot_layers = _make_mlp(k_prot, protein_dims)
    drug_layers = _make_mlp(k_drug, drug_dims)

    # pack all tiny row vectors (per-layer shifts, b1, w2_row) into ONE lane-dense buffer
    vec_w = _round_up(max([CLS_HIDDEN_PAD] + list(protein_dims[1:]) + list(drug_dims[1:])),
                      LANE)
    rows = []
    for layer in prot_layers:
        rows.append(jnp.pad(layer["shift"], (0, vec_w - layer["shift"].shape[0])))
    for layer in drug_layers:
        rows.append(jnp.pad(layer["shift"], (0, vec_w - layer["shift"].shape[0])))
    rows.append(jnp.pad(b1p, (0, vec_w - CLS_HIDDEN_PAD)))
    rows.append(jnp.pad(w2_row, (0, vec_w - CLS_HIDDEN_PAD)))
    vecs = jnp.stack(rows, axis=0)                        # [n_prot+n_drug+2, vec_w]

    return {
        "protein_w": [l["w"] for l in prot_layers],
        "drug_w": [l["w"] for l in drug_layers],
        "w1_pack": w1_pack,
        "vecs": vecs,
        "b2": b2[0],                                      # scalar, goes to SMEM
    }


# ---------------------------------------------------------------------------
# Forward pass (mirrors GraphClassifier.forward after the DGL stage) — one launch
# ---------------------------------------------------------------------------
def graph_classifier_forward(params, protein_embed, drug_embed, labels,
                             g_out, old_g_backbone, h_g_out, loss_weight):
    # TODO(synk): g_out / old_g_backbone / h_g_out stand in for the GCN /
    # backbone graph readouts (DGL graph ops not translatable to Pallas).
    b = protein_embed.shape[0]
    labels_f = labels.astype(jnp.float32).reshape(b, 1)

    prot_w = params["protein_w"]
    drug_w = params["drug_w"]
    prot_out_dims = tuple(int(w.shape[1]) for w in prot_w)
    drug_out_dims = tuple(int(w.shape[1]) for w in drug_w)
    p_dim = int(prot_out_dims[-1]) if prot_out_dims else int(protein_embed.shape[1])
    d_dim = int(drug_out_dims[-1]) if drug_out_dims else int(drug_embed.shape[1])
    e_dim = int(old_g_backbone.shape[1])
    k_pack = int(params["w1_pack"].shape[0])

    # runtime scalars via SMEM (no recompile when loss_weight changes)
    scalars = jnp.stack([jnp.asarray(loss_weight, jnp.float32),
                         params["b2"].astype(jnp.float32)])

    inputs = [protein_embed, drug_embed, labels_f, old_g_backbone, g_out, h_g_out]
    inputs += list(prot_w) + list(drug_w)
    inputs += [params["w1_pack"], params["vecs"], scalars]

    # advisory cost estimate (static python ints) so XLA can schedule around the call
    flops = 2 * b * b * e_dim + 2 * b * k_pack * CLS_HIDDEN_PAD
    din = int(protein_embed.shape[1])
    for dout in prot_out_dims:
        flops += 2 * b * din * dout
        din = dout
    din = int(drug_embed.shape[1])
    for dout in drug_out_dims:
        flops += 2 * b * din * dout
        din = dout
    transcendentals = 3 * b * b + 8 * b
    bytes_accessed = sum(int(x.size) * x.dtype.itemsize for x in inputs) + (b + 1) * 4

    kernel = functools.partial(
        _fused_forward_kernel,
        prot_out_dims=prot_out_dims, drug_out_dims=drug_out_dims,
        p_dim=p_dim, d_dim=d_dim, e_dim=e_dim,
    )

    logits, loss2d = pl.pallas_call(
        kernel,
        out_shape=(jax.ShapeDtypeStruct((b, 1), jnp.float32),
                   jax.ShapeDtypeStruct((1, 1), jnp.float32)),
        in_specs=[VMEM_SPEC] * (len(inputs) - 1) + [SMEM_SPEC],
        out_specs=(VMEM_SPEC, VMEM_SPEC),
        scratch_shapes=[pltpu.VMEM((b, k_pack), jnp.float32)],
        cost_estimate=pl.CostEstimate(flops=flops,
                                      transcendentals=transcendentals,
                                      bytes_accessed=bytes_accessed),
    )(*inputs)

    return loss2d[0, 0], logits, labels_f


# ---------------------------------------------------------------------------
if __name__ == "__main__":
    B = 8
    EMBED_DIM = 32
    DRUG_DIMS = [64, 32]
    PROTEIN_DIMS = [64, 32]
    LOSS_WEIGHT = 0.1

    key = jax.random.PRNGKey(0)
    k_params, k_p, k_d, k_l, k_g, k_og, k_hg = jax.random.split(key, 7)

    params = init_params(k_params, DRUG_DIMS, PROTEIN_DIMS, EMBED_DIM)

    protein_embed = jax.random.normal(k_p, (B, PROTEIN_DIMS[0]), jnp.float32)
    drug_embed = jax.random.normal(k_d, (B, DRUG_DIMS[0]), jnp.float32)
    labels = (jax.random.uniform(k_l, (B,)) > 0.5).astype(jnp.int32)
    g_out = jax.random.normal(k_g, (B, EMBED_DIM), jnp.float32)
    old_g_backbone = jax.random.normal(k_og, (B, EMBED_DIM), jnp.float32)
    h_g_out = jax.random.normal(k_hg, (B, EMBED_DIM), jnp.float32)

    fwd = jax.jit(graph_classifier_forward)
    loss, logits, labels_out = fwd(
        params, protein_embed, drug_embed, labels,
        g_out, old_g_backbone, h_g_out, LOSS_WEIGHT
    )
    jax.block_until_ready((loss, logits, labels_out))

    assert logits.shape == (B, 1) and labels_out.shape == (B, 1) and loss.shape == ()
    assert bool(jnp.isfinite(loss))
    print("KERNEL_OK")
</pallas_src>

<mosaic_0001>
module attributes {stable_mosaic.version = 11 : i64} {
  func.func @_fused_forward_kernel(%arg0: memref<8x64xf32, #tpu.memory_space<vmem>>, %arg1: memref<8x64xf32, #tpu.memory_space<vmem>>, %arg2: memref<8x1xf32, #tpu.memory_space<vmem>>, %arg3: memref<8x32xf32, #tpu.memory_space<vmem>>, %arg4: memref<8x32xf32, #tpu.memory_space<vmem>>, %arg5: memref<8x32xf32, #tpu.memory_space<vmem>>, %arg6: memref<64x32xf32, #tpu.memory_space<vmem>>, %arg7: memref<64x32xf32, #tpu.memory_space<vmem>>, %arg8: memref<640x128xf32, #tpu.memory_space<vmem>>, %arg9: memref<4x128xf32, #tpu.memory_space<vmem>>, %arg10: memref<2xf32, #tpu.memory_space<smem>>, %arg11: memref<8x1xf32, #tpu.memory_space<vmem>>, %arg12: memref<1x1xf32, #tpu.memory_space<vmem>>, %arg13: memref<8x640xf32, #tpu.memory_space<vmem>>) attributes {dimension_semantics = [], scalar_prefetch = 0 : i64, scratch_operands = 1 : i64, tpu.core_type = #tpu.core_type<tc>} {
    %c0 = arith.constant 0 : index
    %0 = memref.load %arg10[%c0] : memref<2xf32, #tpu.memory_space<smem>>
    %c1 = arith.constant 1 : index
    %1 = memref.load %arg10[%c1] : memref<2xf32, #tpu.memory_space<smem>>
    %c0_0 = arith.constant 0 : index
    %c0_1 = arith.constant 0 : index
    %2 = vector.load %arg3[%c0_0, %c0_1] : memref<8x32xf32, #tpu.memory_space<vmem>>, vector<8x32xf32>
    %c0_2 = arith.constant 0 : index
    %c0_3 = arith.constant 0 : index
    %3 = vector.load %arg5[%c0_2, %c0_3] : memref<8x32xf32, #tpu.memory_space<vmem>>, vector<8x32xf32>
    %4 = arith.mulf %2, %2 : vector<8x32xf32>
    %cst = arith.constant dense<0.000000e+00> : vector<8xf32>
    %5 = vector.multi_reduction <add>, %4, %cst [1] : vector<8x32xf32> to vector<8xf32>
    %6 = vector.shape_cast %5 : vector<8xf32> to vector<8x1xf32>
    %7 = math.sqrt %6 : vector<8x1xf32>
    %cst_4 = arith.constant 9.99999996E-13 : f32
    %8 = vector.broadcast %cst_4 : f32 to vector<8x1xf32>
    %9 = arith.maximumf %7, %8 : vector<8x1xf32>
    %10 = vector.broadcast %9 : vector<8x1xf32> to vector<8x32xf32>
    %11 = arith.divf %2, %10 : vector<8x32xf32>
    %12 = arith.mulf %3, %3 : vector<8x32xf32>
    %cst_5 = arith.constant dense<0.000000e+00> : vector<32xf32>
    %13 = vector.multi_reduction <add>, %12, %cst_5 [0] : vector<8x32xf32> to vector<32xf32>
    %14 = vector.shape_cast %13 : vector<32xf32> to vector<1x32xf32>
    %15 = math.sqrt %14 : vector<1x32xf32>
    %cst_6 = arith.constant 9.99999996E-13 : f32
    %16 = vector.broadcast %cst_6 : f32 to vector<1x32xf32>
    %17 = arith.maximumf %15, %16 : vector<1x32xf32>
    %18 = vector.broadcast %17 : vector<1x32xf32> to vector<8x32xf32>
    %19 = arith.divf %3, %18 : vector<8x32xf32>
    %cst_7 = arith.constant dense<0.000000e+00> : vector<8x8xf32>
    %20 = tpu.matmul %11, %19, %cst_7 {dimension_numbers = #tpu.dot_dimension_numbers<[1], [1], [0], [0], [0, 0, 1, 0], [], []>} : vector<8x32xf32>, vector<8x32xf32>, vector<8x8xf32> -> vector<8x8xf32>
    %21 = arith.negf %20 : vector<8x8xf32>
    %22 = math.exp %21 : vector<8x8xf32>
    %cst_8 = arith.constant 1.000000e+00 : f32
    %23 = vector.broadcast %cst_8 : f32 to vector<8x8xf32>
    %24 = arith.addf %23, %22 : vector<8x8xf32>
    %25 = arith.divf %23, %24 : vector<8x8xf32>
    %26 = tpu.iota {dimensions = array<i32: 0>} : vector<8x8xi32>
    %27 = tpu.iota {dimensions = array<i32: 1>} : vector<8x8xi32>
    %28 = arith.cmpi eq, %26, %27 : vector<8x8xi32>
    %29 = arith.extui %28 : vector<8x8xi1> to vector<8x8xi32>
    %30 = arith.sitofp %29 : vector<8x8xi32> to vector<8x8xf32>
    %31 = math.log %25 : vector<8x8xf32>
    %cst_9 = arith.constant -1.000000e+02 : f32
    %32 = vector.broadcast %cst_9 : f32 to vector<8x8xf32>
    %33 = arith.maximumf %31, %32 : vector<8x8xf32>
    %cst_10 = arith.constant 1.000000e+00 : f32
    %34 = vector.broadcast %cst_10 : f32 to vector<8x8xf32>
    %35 = arith.subf %34, %25 : vector<8x8xf32>
    %36 = math.log %35 : vector<8x8xf32>
    %cst_11 = arith.constant -1.000000e+02 : f32
    %37 = vector.broadcast %cst_11 : f32 to vector<8x8xf32>
    %38 = arith.maximumf %36, %37 : vector<8x8xf32>
    %39 = arith.mulf %30, %33 : vector<8x8xf32>
    %cst_12 = arith.constant 1.000000e+00 : f32
    %40 = vector.broadcast %cst_12 : f32 to vector<8x8xf32>
    %41 = arith.subf %40, %30 : vector<8x8xf32>
    %42 = arith.mulf %41, %38 : vector<8x8xf32>
    %43 = arith.addf %39, %42 : vector<8x8xf32>
    %cst_13 = arith.constant 0.000000e+00 : f32
    %44 = vector.broadcast %cst_13 : f32 to vector<8x8xf32>
    %45 = arith.subf %44, %43 : vector<8x8xf32>
    %cst_14 = arith.constant dense<0.000000e+00> : vector<8xf32>
    %46 = vector.multi_reduction <add>, %45, %cst_14 [1] : vector<8x8xf32> to vector<8xf32>
    %47 = vector.shape_cast %46 : vector<8xf32> to vector<8x1xf32>
    %cst_15 = arith.constant dense<0.000000e+00> : vector<1xf32>
    %48 = vector.multi_reduction <add>, %47, %cst_15 [0] : vector<8x1xf32> to vector<1xf32>
    %49 = vector.shape_cast %48 : vector<1xf32> to vector<1x1xf32>
    %cst_16 = arith.constant 6.400000e+01 : f32
    %50 = vector.broadcast %cst_16 : f32 to vector<1x1xf32>
    %51 = arith.divf %49, %50 : vector<1x1xf32>
    %c0_17 = arith.constant 0 : index
    %c0_18 = arith.constant 0 : index
    %52 = vector.load %arg0[%c0_17, %c0_18] : memref<8x64xf32, #tpu.memory_space<vmem>>, vector<8x64xf32>
    %c0_19 = arith.constant 0 : index
    %c0_20 = arith.constant 0 : index
    %53 = vector.load %arg9[%c0_19, %c0_20] : memref<4x128xf32, #tpu.memory_space<vmem>>, vector<1x32xf32>
    %c0_21 = arith.constant 0 : index
    %c0_22 = arith.constant 0 : index
    %54 = vector.load %arg6[%c0_21, %c0_22] : memref<64x32xf32, #tpu.memory_space<vmem>>, vector<64x32xf32>
    %cst_23 = arith.constant dense<0.000000e+00> : vector<8x32xf32>
    %55 = tpu.matmul %52, %54, %cst_23 {dimension_numbers = #tpu.dot_dimension_numbers<[1], [0], [0], [1], [0, 0, 1, 1], [], []>} : vector<8x64xf32>, vector<64x32xf32>, vector<8x32xf32> -> vector<8x32xf32>
    %56 = vector.broadcast %53 : vector<1x32xf32> to vector<8x32xf32>
    %57 = arith.addf %55, %56 : vector<8x32xf32>
    %cst_24 = arith.constant 0.000000e+00 : f32
    %58 = vector.broadcast %cst_24 : f32 to vector<8x32xf32>
    %59 = arith.maximumf %57, %58 : vector<8x32xf32>
    %c0_25 = arith.constant 0 : index
    %c0_26 = arith.constant 0 : index
    %60 = vector.load %arg1[%c0_25, %c0_26] : memref<8x64xf32, #tpu.memory_space<vmem>>, vector<8x64xf32>
    %c1_27 = arith.constant 1 : index
    %c0_28 = arith.constant 0 : index
    %61 = vector.load %arg9[%c1_27, %c0_28] : memref<4x128xf32, #tpu.memory_space<vmem>>, vector<1x32xf32>
    %c0_29 = arith.constant 0 : index
    %c0_30 = arith.constant 0 : index
    %62 = vector.load %arg7[%c0_29, %c0_30] : memref<64x32xf32, #tpu.memory_space<vmem>>, vector<64x32xf32>
    %cst_31 = arith.constant dense<0.000000e+00> : vector<8x32xf32>
    %63 = tpu.matmul %60, %62, %cst_31 {dimension_numbers = #tpu.dot_dimension_numbers<[1], [0], [0], [1], [0, 0, 1, 1], [], []>} : vector<8x64xf32>, vector<64x32xf32>, vector<8x32xf32> -> vector<8x32xf32>
    %64 = vector.broadcast %61 : vector<1x32xf32> to vector<8x32xf32>
    %65 = arith.addf %63, %64 : vector<8x32xf32>
    %cst_32 = arith.constant 0.000000e+00 : f32
    %66 = vector.broadcast %cst_32 : f32 to vector<8x32xf32>
    %67 = arith.maximumf %65, %66 : vector<8x32xf32>
    %c0_33 = arith.constant 0 : index
    %c0_34 = arith.constant 0 : index
    %68 = vector.load %arg4[%c0_33, %c0_34] : memref<8x32xf32, #tpu.memory_space<vmem>>, vector<8x32xf32>
    %69 = arith.mulf %68, %68 : vector<8x32xf32>
    %cst_35 = arith.constant dense<0.000000e+00> : vector<8xf32>
    %70 = vector.multi_reduction <add>, %69, %cst_35 [1] : vector<8x32xf32> to vector<8xf32>
    %71 = vector.shape_cast %70 : vector<8xf32> to vector<8x1xf32>
    %72 = math.sqrt %71 : vector<8x1xf32>
    %cst_36 = arith.constant 9.99999996E-13 : f32
    %73 = vector.broadcast %cst_36 : f32 to vector<8x1xf32>
    %74 = arith.maximumf %72, %73 : vector<8x1xf32>
    %75 = vector.broadcast %74 : vector<8x1xf32> to vector<8x32xf32>
    %76 = arith.divf %68, %75 : vector<8x32xf32>
    %77 = arith.mulf %3, %3 : vector<8x32xf32>
    %cst_37 = arith.constant dense<0.000000e+00> : vector<8xf32>
    %78 = vector.multi_reduction <add>, %77, %cst_37 [1] : vector<8x32xf32> to vector<8xf32>
    %79 = vector.shape_cast %78 : vector<8xf32> to vector<8x1xf32>
    %80 = math.sqrt %79 : vector<8x1xf32>
    %cst_38 = arith.constant 9.99999996E-13 : f32
    %81 = vector.broadcast %cst_38 : f32 to vector<8x1xf32>
    %82 = arith.maximumf %80, %81 : vector<8x1xf32>
    %83 = vector.broadcast %82 : vector<8x1xf32> to vector<8x32xf32>
    %84 = arith.divf %3, %83 : vector<8x32xf32>
    %cst_39 = arith.constant 0.000000e+00 : f32
    %85 = vector.broadcast %cst_39 : f32 to vector<8x640xf32>
    %c0_40 = arith.constant 0 : index
    %c0_41 = arith.constant 0 : index
    %86 = vector.load %arg13[%c0_40, %c0_41] : memref<8x640xf32, #tpu.memory_space<vmem>>, vector<8x640xf32>
    tpu.vector_store %arg13[%c0_40, %c0_41], %85 {strides = array<i32>} : memref<8x640xf32, #tpu.memory_space<vmem>>, vector<8x640xf32>,
    %c0_42 = arith.constant 0 : index
    %c0_43 = arith.constant 0 : index
    %87 = vector.load %arg13[%c0_42, %c0_43] : memref<8x640xf32, #tpu.memory_space<vmem>>, vector<8x32xf32>
    tpu.vector_store %arg13[%c0_42, %c0_43], %59 {strides = array<i32>} : memref<8x640xf32, #tpu.memory_space<vmem>>, vector<8x32xf32>,
    %c0_44 = arith.constant 0 : index
    %c128 = arith.constant 128 : index
    %88 = vector.load %arg13[%c0_44, %c128] : memref<8x640xf32, #tpu.memory_space<vmem>>, vector<8x32xf32>
    tpu.vector_store %arg13[%c0_44, %c128], %67 {strides = array<i32>} : memref<8x640xf32, #tpu.memory_space<vmem>>, vector<8x32xf32>,
    %c0_45 = arith.constant 0 : index
    %c256 = arith.constant 256 : index
    %89 = vector.load %arg13[%c0_45, %c256] : memref<8x640xf32, #tpu.memory_space<vmem>>, vector<8x32xf32>
    tpu.vector_store %arg13[%c0_45, %c256], %11 {strides = array<i32>} : memref<8x640xf32, #tpu.memory_space<vmem>>, vector<8x32xf32>,
    %c0_46 = arith.constant 0 : index
    %c384 = arith.constant 384 : index
    %90 = vector.load %arg13[%c0_46, %c384] : memref<8x640xf32, #tpu.memory_space<vmem>>, vector<8x32xf32>
    tpu.vector_store %arg13[%c0_46, %c384], %76 {strides = array<i32>} : memref<8x640xf32, #tpu.memory_space<vmem>>, vector<8x32xf32>,
    %c0_47 = arith.constant 0 : index
    %c512 = arith.constant 512 : index
    %91 = vector.load %arg13[%c0_47, %c512] : memref<8x640xf32, #tpu.memory_space<vmem>>, vector<8x32xf32>
    tpu.vector_store %arg13[%c0_47, %c512], %84 {strides = array<i32>} : memref<8x640xf32, #tpu.memory_space<vmem>>, vector<8x32xf32>,
    %c2 = arith.constant 2 : index
    %c0_48 = arith.constant 0 : index
    %92 = vector.load %arg9[%c2, %c0_48] : memref<4x128xf32, #tpu.memory_space<vmem>>, vector<1x128xf32>
    %c3 = arith.constant 3 : index
    %c0_49 = arith.constant 0 : index
    %93 = vector.load %arg9[%c3, %c0_49] : memref<4x128xf32, #tpu.memory_space<vmem>>, vector<1x128xf32>
    %c0_50 = arith.constant 0 : index
    %c0_51 = arith.constant 0 : index
    %94 = vector.load %arg13[%c0_50, %c0_51] : memref<8x640xf32, #tpu.memory_space<vmem>>, vector<8x640xf32>
    %c0_52 = arith.constant 0 : index
    %c0_53 = arith.constant 0 : index
    %95 = vector.load %arg8[%c0_52, %c0_53] : memref<640x128xf32, #tpu.memory_space<vmem>>, vector<640x128xf32>
    %cst_54 = arith.constant dense<0.000000e+00> : vector<8x128xf32>
    %96 = tpu.matmul %94, %95, %cst_54 {dimension_numbers = #tpu.dot_dimension_numbers<[1], [0], [0], [1], [0, 0, 1, 1], [], []>} : vector<8x640xf32>, vector<640x128xf32>, vector<8x128xf32> -> vector<8x128xf32>
    %97 = vector.broadcast %92 : vector<1x128xf32> to vector<8x128xf32>
    %98 = arith.addf %96, %97 : vector<8x128xf32>
    %cst_55 = arith.constant 0.000000e+00 : f32
    %99 = vector.broadcast %cst_55 : f32 to vector<8x128xf32>
    %100 = arith.maximumf %98, %99 : vector<8x128xf32>
    %101 = vector.broadcast %93 : vector<1x128xf32> to vector<8x128xf32>
    %102 = arith.mulf %100, %101 : vector<8x128xf32>
    %cst_56 = arith.constant dense<0.000000e+00> : vector<8xf32>
    %103 = vector.multi_reduction <add>, %102, %cst_56 [1] : vector<8x128xf32> to vector<8xf32>
    %104 = vector.shape_cast %103 : vector<8xf32> to vector<8x1xf32>
    %105 = vector.broadcast %1 : f32 to vector<8x1xf32>
    %106 = arith.addf %104, %105 : vector<8x1xf32>
    %107 = arith.negf %106 : vector<8x1xf32>
    %108 = math.exp %107 : vector<8x1xf32>
    %cst_57 = arith.constant 1.000000e+00 : f32
    %109 = vector.broadcast %cst_57 : f32 to vector<8x1xf32>
    %110 = arith.addf %109, %108 : vector<8x1xf32>
    %111 = arith.divf %109, %110 : vector<8x1xf32>
    %c0_58 = arith.constant 0 : index
    %c0_59 = arith.constant 0 : index
    %112 = vector.load %arg11[%c0_58, %c0_59] : memref<8x1xf32, #tpu.memory_space<vmem>>, vector<8x1xf32>
    tpu.vector_store %arg11[%c0_58, %c0_59], %111 {strides = array<i32>} : memref<8x1xf32, #tpu.memory_space<vmem>>, vector<8x1xf32>,
    %c0_60 = arith.constant 0 : index
    %c0_61 = arith.constant 0 : index
    %113 = vector.load %arg2[%c0_60, %c0_61] : memref<8x1xf32, #tpu.memory_space<vmem>>, vector<8x1xf32>
    %114 = math.log %111 : vector<8x1xf32>
    %cst_62 = arith.constant -1.000000e+02 : f32
    %115 = vector.broadcast %cst_62 : f32 to vector<8x1xf32>
    %116 = arith.maximumf %114, %115 : vector<8x1xf32>
    %cst_63 = arith.constant 1.000000e+00 : f32
    %117 = vector.broadcast %cst_63 : f32 to vector<8x1xf32>
    %118 = arith.subf %117, %111 : vector<8x1xf32>
    %119 = math.log %118 : vector<8x1xf32>
    %cst_64 = arith.constant -1.000000e+02 : f32
    %120 = vector.broadcast %cst_64 : f32 to vector<8x1xf32>
    %121 = arith.maximumf %119, %120 : vector<8x1xf32>
    %122 = arith.mulf %113, %116 : vector<8x1xf32>
    %cst_65 = arith.constant 1.000000e+00 : f32
    %123 = vector.broadcast %cst_65 : f32 to vector<8x1xf32>
    %124 = arith.subf %123, %113 : vector<8x1xf32>
    %125 = arith.mulf %124, %121 : vector<8x1xf32>
    %126 = arith.addf %122, %125 : vector<8x1xf32>
    %cst_66 = arith.constant 0.000000e+00 : f32
    %127 = vector.broadcast %cst_66 : f32 to vector<8x1xf32>
    %128 = arith.subf %127, %126 : vector<8x1xf32>
    %cst_67 = arith.constant dense<0.000000e+00> : vector<1xf32>
    %129 = vector.multi_reduction <add>, %128, %cst_67 [0] : vector<8x1xf32> to vector<1xf32>
    %130 = vector.shape_cast %129 : vector<1xf32> to vector<1x1xf32>
    %cst_68 = arith.constant 8.000000e+00 : f32
    %131 = vector.broadcast %cst_68 : f32 to vector<1x1xf32>
    %132 = arith.divf %130, %131 : vector<1x1xf32>
    %133 = vector.broadcast %0 : f32 to vector<1x1xf32>
    %134 = arith.mulf %133, %51 : vector<1x1xf32>
    %135 = arith.addf %132, %134 : vector<1x1xf32>
    %c0_69 = arith.constant 0 : index
    %c0_70 = arith.constant 0 : index
    %136 = vector.load %arg12[%c0_69, %c0_70] : memref<1x1xf32, #tpu.memory_space<vmem>>, vector<1x1xf32>
    tpu.vector_store %arg12[%c0_69, %c0_70], %135 {strides = array<i32>} : memref<1x1xf32, #tpu.memory_space<vmem>>, vector<1x1xf32>,
    return
  }
}

</mosaic_0001>

<llo_original>
// kernel: graph_classifier_forward.1
$region0: #{graph_classifier_forward.1}
  #allocation0 [shape = 'u32[]', space=smem, size = 0x4, offset = 0x4, fixed_abs, tag = 'smem constant byte address 0x4 - core index']
  #allocation1 [shape = 'u32[144,128]{1,0:T(1,128)}', space=vmem, size = 0x12000, scoped, tag = 'internal scratch']
  #allocation2 [shape = 'f32[8,640]{1,0:T(8,128)}', space=vmem, size = 0x5000, scoped, tag = 'scratch operand']
  %s0 = inlined_call_operand.vmem [shape: f32[8,64], index: 0, kind: input, shape index: {}]
  %s1 = inlined_call_operand.vmem [shape: f32[8,64], index: 1, kind: input, shape index: {}]
  %s2 = inlined_call_operand.vmem [shape: f32[8,1], index: 2, kind: input, shape index: {}]
  %s3 = inlined_call_operand.vmem [shape: f32[8,32], index: 3, kind: input, shape index: {}]
  %s4 = inlined_call_operand.vmem [shape: f32[8,32], index: 4, kind: input, shape index: {}]
  %s5 = inlined_call_operand.vmem [shape: f32[8,32], index: 5, kind: input, shape index: {}]
  %s6 = inlined_call_operand.vmem [shape: f32[64,32], index: 6, kind: input, shape index: {}]
  %s7 = inlined_call_operand.vmem [shape: f32[64,32], index: 7, kind: input, shape index: {}]
  %s8 = inlined_call_operand.hbm [shape: f32[640,128], index: 8, kind: input, shape index: {}]
  %s9 = inlined_call_operand.vmem [shape: f32[4,128], index: 9, kind: input, shape index: {}]
  %s10 = inlined_call_operand.vmem [shape: f32[2], index: 10, kind: input, shape index: {}]
  %s11 = inlined_call_operand.vmem [shape: f32[8,1], index: 11, kind: output, shape index: {0}]
  %s12 = inlined_call_operand.hbm [shape: f32[1,1], index: 12, kind: output, shape index: {1}]
  %13 = xla_tuple %s11, %s12
  %s14 = sld [smem:[#allocation0]]
  $region70: #{graph_classifier_forward.1} parent=0
    _
  %s16 = ssub.s32 1, %s14
  %s17 = scalar_select 0, %s16, %s14
  $region1: #{graph_classifier_forward.1} parent=0
    #allocation3 [shape = 'u8[327680]{0}', space=vmem, size = 0x50000, scoped, tag = 'input window, operand 8, single buffered']
    #allocation4 [shape = 's32[1]{0}', space=sflag, size = 0x4, scoped, tag = 'scoped memory for graph_classifier_forward.1']
    #allocation5 [shape = 's32[1]{0}', space=sflag, size = 0x4, scoped, tag = 'scoped memory for graph_classifier_forward.1']
    #allocation6 [shape = 's32[1]{0}', space=sflag, size = 0x4, scoped, tag = 'scoped memory for graph_classifier_forward.1']
    #allocation7 [shape = 'u8[512]{0}', space=smem, size = 0x200, scoped, tag = 'input window, operand 10, single buffered']
    #allocation8 [shape = 'u8[512]{0}', space=vmem, size = 0x400, scoped, tag = 'output window, operand 1, single buffered']
    %18 = vsyncpa [#allocation4], 0
    %19 = vsyncpa [#allocation6], 0
    %20 = vsyncpa [#allocation5], 0
    // Predicated region
    $region2: #{graph_classifier_forward.1} parent=1 // pred_check
      _
    $region3: #{graph_classifier_forward.1} parent=1 // pred_check_branch
      %22 = sbr.rel (0) target = $region5
    $region4: #{graph_classifier_forward.1} parent=1 // pred_region
      _
    $region5: #{graph_classifier_forward.1} parent=1 // pred_fallthru
      _
    // Predicated region
    $region6: #{graph_classifier_forward.1} parent=1 // pred_check
      _
    $region7: #{graph_classifier_forward.1} parent=1 // pred_check_branch
      %24 = sbr.rel (0) target = $region9
    $region8: #{graph_classifier_forward.1} parent=1 // pred_region
      _
    $region9: #{graph_classifier_forward.1} parent=1 // pred_fallthru
      _
    // Predicated region
    $region10: #{graph_classifier_forward.1} parent=1 // pred_check
      _
    $region11: #{graph_classifier_forward.1} parent=1 // pred_check_branch
      %26 = sbr.rel (0) target = $region13
    $region12: #{graph_classifier_forward.1} parent=1 // pred_region
      _
    $region13: #{graph_classifier_forward.1} parent=1 // pred_fallthru
      _
    // Predicated region
    $region14: #{graph_classifier_forward.1} parent=1 // pred_check
      _
    $region15: #{graph_classifier_forward.1} parent=1 // pred_check_branch
      %28 = sbr.rel (0) target = $region17
    $region16: #{graph_classifier_forward.1} parent=1 // pred_region
      _
    $region17: #{graph_classifier_forward.1} parent=1 // pred_fallthru
      _
    // Predicated region
    $region18: #{graph_classifier_forward.1} parent=1 // pred_check
      _
    $region19: #{graph_classifier_forward.1} parent=1 // pred_check_branch
      %30 = sbr.rel (0) target = $region21
    $region20: #{graph_classifier_forward.1} parent=1 // pred_region
      _
    $region21: #{graph_classifier_forward.1} parent=1 // pred_fallthru
      _
    // Predicated region
    $region22: #{graph_classifier_forward.1} parent=1 // pred_check
      _
    $region23: #{graph_classifier_forward.1} parent=1 // pred_check_branch
      %32 = sbr.rel (0) target = $region25
    $region24: #{graph_classifier_forward.1} parent=1 // pred_region
      _
    $region25: #{graph_classifier_forward.1} parent=1 // pred_fallthru
      _
    // Predicated region
    $region26: #{graph_classifier_forward.1} parent=1 // pred_check
      _
    $region27: #{graph_classifier_forward.1} parent=1 // pred_check_branch
      %34 = sbr.rel (0) target = $region29
    $region28: #{graph_classifier_forward.1} parent=1 // pred_region
      _
    $region29: #{graph_classifier_forward.1} parent=1 // pred_fallthru
      _
    // Predicated region
    $region30: #{graph_classifier_forward.1} parent=1 // pred_check
      _
    $region31: #{graph_classifier_forward.1} parent=1 // pred_check_branch
      %36 = sbr.rel (0) target = $region33
    $region32: #{graph_classifier_forward.1} parent=1 // pred_region
      _
    $region33: #{graph_classifier_forward.1} parent=1 // pred_fallthru
      _
    // Predicated region
    $region34: #{graph_classifier_forward.1} parent=1 // pred_check
      _
    $region35: #{graph_classifier_forward.1} parent=1 // pred_check_branch
      %38 = sbr.rel (0) target = $region37
    $region36: #{graph_classifier_forward.1} parent=1 // pred_region
      %s40 = ssub.s32 10240, 10240
      %41 = vsyncadd [#allocation4], %s40
      %s42 = sshll.u32 [#allocation3], 4
      %s43 = int_to_ptr.vmem [resolvable:$true] %s42
      %48 = dma.hbm_to_vmem [thread:$0]  %s8, 10240, %s43, [#allocation4], 128, 128, 8
    $region37: #{graph_classifier_forward.1} parent=1 // pred_fallthru
      _
    // Predicated region
    $region38: #{graph_classifier_forward.1} parent=1 // pred_check
      _
    $region39: #{graph_classifier_forward.1} parent=1 // pred_check_branch
      %50 = sbr.rel (0) target = $region41
    $region40: #{graph_classifier_forward.1} parent=1 // pred_region
      _
    $region41: #{graph_classifier_forward.1} parent=1 // pred_fallthru
      _
    // Predicated region
    $region42: #{graph_classifier_forward.1} parent=1 // pred_check
      _
    $region43: #{graph_classifier_forward.1} parent=1 // pred_check_branch
      %52 = sbr.rel (0) target = $region45
    $region44: #{graph_classifier_forward.1} parent=1 // pred_region
      %s54 = ssub.s32 16, 16
      %55 = vsyncadd [#allocation6], %s54
      %s57 = sshll.u32 %s10, 4
      %s58 = int_to_ptr.vmem [resolvable:$true] %s57
      %60 = dma.vmem_to_smem %s58, 16, [#allocation7], [#allocation6]
    $region45: #{graph_classifier_forward.1} parent=1 // pred_fallthru
      _
    // Predicated region
    $region46: #{graph_classifier_forward.1} parent=1 // pred_check
      _
    $region47: #{graph_classifier_forward.1} parent=1 // pred_check_branch
      %62 = sbr.rel (0) target = $region49
    $region48: #{graph_classifier_forward.1} parent=1 // pred_region
      %63 = dma.done [#allocation4], 10240
    $region49: #{graph_classifier_forward.1} parent=1 // pred_fallthru
      _
    // Predicated region
    $region50: #{graph_classifier_forward.1} parent=1 // pred_check
      _
    $region51: #{graph_classifier_forward.1} parent=1 // pred_check_branch
      %65 = sbr.rel (0) target = $region53
    $region52: #{graph_classifier_forward.1} parent=1 // pred_region
      %66 = dma.done [#allocation6], 16
    $region53: #{graph_classifier_forward.1} parent=1 // pred_fallthru
      _
    %67 = sfence
    %s68 = sld [smem:[#allocation7]]
    %s69 = sld [smem:[#allocation7 + $0x1]]
    %v70 = vld [vmem:[%s3] sm:$0xff]
    %v71 = vld [vmem:[%s5] sm:$0xff]
    %v72 = vmul.f32 %v70, %v70
    %vm73 = vcmask 261120
    %v74 = vsel %vm73, %v72, 0.0
    %75 = vadd.xlane.f32.xlu0 %v74
    %v76 = vpop.xlane.xlu0 %75
    %v77 = vrsqrt.pop %v76
    %v78 = vmul.f32 %v76, %v77
    %vm79 = vcmp.eq.f32.partialorder %v76, inf
    %v80 = vsel %vm79, %v76, %v78
    %vm81 = vcmp.eq.f32.partialorder %v76, 0.0
    %v82 = vand.u32 %v76, 2147483648
    %v83 = vsel %vm81, %v82, %v80
    %v84 = vmax.f32 %v83, 1e-12
    %v85 = vrcp.pop %v84
    %v86 = vmul.f32 %v70, %v85
    %v87 = vmul.f32 %v71, %v71
    %v88 = vsel %vm73, %v87, 0.0
    %v89 = vrot.slane %v88, 4
    %v90 = vadd.f32 %v88, %v89
    %v91 = vrot.slane %v90, 2
    %v92 = vadd.f32 %v90, %v91
    %v93 = vrot.slane %v92, 1
    %v94 = vadd.f32 %v92, %v93
    %v95 = vrsqrt.pop %v94
    %v96 = vmul.f32 %v94, %v95
    %vm97 = vcmp.eq.f32.partialorder %v94, inf
    %v98 = vsel %vm97, %v94, %v96
    %vm99 = vcmp.eq.f32.partialorder %v94, 0.0
    %v100 = vand.u32 %v94, 2147483648
    %v101 = vsel %vm99, %v100, %v98
    %v102 = vmax.f32 %v101, 1e-12
    %v103 = vrcp.pop %v102
    %v104 = vmul.f32 %v71, %v103
    %v106 = vsel %vm73, %v86, 0
    %v109 = vsel %vm73, %v104, 0
    %111 = vmatprep.subr.mxu0 0.0
    %112 = vmatpush1.xpose.msra.mxu0 %v109
    %113 = vmatprep.subr.mxu0 0.0
    %114 = vmatpush1.xpose.msra.mxu0 0.0
    %115 = vmatprep.subr.mxu0 0.0
    %116 = vmatpush1.xpose.msra.mxu0 0.0
    %117 = vmatprep.subr.mxu0 0.0
    %118 = vmatpush1.xpose.msra.mxu0 0.0
    %119 = vmatprep.subr.mxu0 0.0
    %120 = vmatpush1.xpose.msra.mxu0 0.0
    %121 = vmatprep.subr.mxu0 0.0
    %122 = vmatpush1.xpose.msra.mxu0 0.0
    %123 = vmatprep.subr.mxu0 0.0
    %124 = vmatpush1.xpose.msra.mxu0 0.0
    %125 = vmatprep.subr.mxu0 0.0
    %126 = vmatpush1.xpose.msra.mxu0 0.0
    %127 = vmatprep.subr.mxu0 0.0
    %128 = vmatpush1.xpose.msra.mxu0 0.0
    %129 = vmatprep.subr.mxu0 0.0
    %130 = vmatpush1.xpose.msra.mxu0 0.0
    %131 = vmatprep.subr.mxu0 0.0
    %132 = vmatpush1.xpose.msra.mxu0 0.0
    %133 = vmatprep.subr.mxu0 0.0
    %134 = vmatpush1.xpose.msra.mxu0 0.0
    %135 = vmatprep.subr.mxu0 0.0
    %136 = vmatpush1.xpose.msra.mxu0 0.0
    %137 = vmatprep.subr.mxu0 0.0
    %138 = vmatpush1.xpose.msra.mxu0 0.0
    %139 = vmatprep.subr.mxu0 0.0
    %140 = vmatpush1.xpose.msra.mxu0 0.0
    %141 = vmatprep.subr.mxu0 0.0
    %142 = vmatpush1.xpose.msra.mxu0 0.0
    %143 = vmatprep.subr.mxu0 0.0
    %144 = vmatpush1.xpose.msra.mxu0 0.0
    %145 = vmatprep.subr.mxu0 0.0
    %146 = vmatpush1.xpose.msra.mxu0 0.0
    %147 = vmatprep.subr.mxu0 0.0
    %148 = vmatpush1.xpose.msra.mxu0 0.0
    %149 = vmatprep.subr.mxu0 0.0
    %150 = vmatpush1.xpose.msra.mxu0 0.0
    %151 = vmatprep.subr.mxu0 0.0
    %152 = vmatpush1.xpose.msra.mxu0 0.0
    %153 = vmatprep.subr.mxu0 0.0
    %154 = vmatpush1.xpose.msra.mxu0 0.0
    %155 = vmatprep.subr.mxu0 0.0
    %156 = vmatpush1.xpose.msra.mxu0 0.0
    %157 = vmatprep.subr.mxu0 0.0
    %158 = vmatpush1.xpose.msra.mxu0 0.0
    %159 = vmatprep.subr.mxu0 0.0
    %160 = vmatpush1.xpose.msra.mxu0 0.0
    %161 = vmatprep.subr.mxu0 0.0
    %162 = vmatpush1.xpose.msra.mxu0 0.0
    %163 = vmatprep.subr.mxu0 0.0
    %164 = vmatpush1.xpose.msra.mxu0 0.0
    %165 = vmatprep.subr.mxu0 0.0
    %166 = vmatpush1.xpose.msra.mxu0 0.0
    %167 = vmatprep.subr.mxu0 0.0
    %168 = vmatpush1.xpose.msra.mxu0 0.0
    %169 = vmatprep.subr.mxu0 0.0
    %170 = vmatpush1.xpose.msra.mxu0 0.0
    %171 = vmatprep.subr.mxu0 0.0
    %172 = vmatpush1.xpose.msra.mxu0 0.0
    %173 = vmatprep.subr.mxu0 0.0
    %174 = vmatpush1.xpose.msra.mxu0 0.0
    %175 = vmatprep.mubr.f32.mxu0 0.0
    %176 = vmatmul.mubr.f32.gmra.mrb[0].mxu0 %v106
    %v177 = vpop.f32.mrb[0].mxu0
    %v178 = vadd.f32 0.0, %v177
    %v179 = vpop.f32.mrb[0].mxu0
    %180 = vdwg.mxu0
    %v181 = vxor.u32 %v178, 2147483648
    %v182 = vmul.f32 %v181, 1.442695
    %v183 = vpow.pop %v182
    %v184 = vadd.f32 %v183, 1.0
    %v185 = vrcp.pop %v184
    %v186 = vmul.f32 1.0, %v185
    %v187 = vlaneseq
    %v188 = vshrl.u32 %v187, 7
    %v189 = vlaneseq
    %v190 = vand.u32 %v189, 127
    %vm191 = vcmp.eq.s32.totalorder %v188, %v190
    %v192 = vsel %vm191, 1, 0
    %v193 = vcvt.s32.f32 %v192
    %v194 = vlog2.pop %v186
    %v195 = vmul.f32 %v194, 0.6931472
    %v196 = vmax.f32 %v195, -100.0
    %v197 = vsub.f32 1.0, %v186
    %v198 = vlog2.pop %v197
    %v199 = vmul.f32 %v198, 0.6931472
    %v200 = vmax.f32 %v199, -100.0
    %v201 = vmul.f32 %v193, %v196
    %v202 = vsub.f32 1.0, %v193
    %v203 = vmul.f32 %v202, %v200
    %v204 = vadd.f32 %v201, %v203
    %v205 = vsub.f32 0.0, %v204
    %vm206 = vcmask 64512
    %v207 = vsel %vm206, %v205, 0.0
    %208 = vadd.xlane.f32.xlu0 %v207
    %v209 = vpop.xlane.xlu0 %208
    %v210 = vrot.slane %v209, 4
    %v211 = vadd.f32 %v209, %v210
    %v212 = vrot.slane %v211, 2
    %v213 = vadd.f32 %v211, %v212
    %v214 = vrot.slane %v213, 1
    %v215 = vadd.f32 %v213, %v214
    %v216 = vrcp.pop 64.0
    %v217 = vmul.f32 %v215, %v216
    %v218 = vld [vmem:[%s0] sm:$0xff]
    %v219 = vld [vmem:[%s9] sm:$0x1]
    %v220 = vld [vmem:[%s6] sm:$0xff]
    %v221 = vld [vmem:[%s6 + $0x8] sm:$0xff]
    %v222 = vld [vmem:[%s6 + $0x10] sm:$0xff]
    %v223 = vld [vmem:[%s6 + $0x18] sm:$0xff]
    %v224 = vld [vmem:[%s6 + $0x20] sm:$0xff]
    %v225 = vld [vmem:[%s6 + $0x28] sm:$0xff]
    %v226 = vld [vmem:[%s6 + $0x30] sm:$0xff]
    %v227 = vld [vmem:[%s6 + $0x38] sm:$0xff]
    %v228 = vlaneseq
    %v229 = vshrl.u32 %v228, 7
    %v230 = vsub.s32 0, %v229
    %v231 = vrot.slane %v219, %v230
    %vm232 = vcmask 523264
    %v234 = vsel %vm232, %v218, 0
    %236 = vmatprep.subr.mxu0 0.0
    %237 = vmatpush1.msra.mxu0 %v220
    %238 = vmatprep.subr.mxu0 0.0
    %239 = vmatpush1.msra.mxu0 %v221
    %240 = vmatprep.subr.mxu0 0.0
    %241 = vmatpush1.msra.mxu0 %v222
    %242 = vmatprep.subr.mxu0 0.0
    %243 = vmatpush1.msra.mxu0 %v223
    %244 = vmatprep.subr.mxu0 0.0
    %245 = vmatpush1.msra.mxu0 %v224
    %246 = vmatprep.subr.mxu0 0.0
    %247 = vmatpush1.msra.mxu0 %v225
    %248 = vmatprep.subr.mxu0 0.0
    %249 = vmatpush1.msra.mxu0 %v226
    %250 = vmatprep.subr.mxu0 0.0
    %251 = vmatpush1.msra.mxu0 %v227
    %252 = vmatprep.subr.mxu0 0.0
    %253 = vmatpush1.msra.mxu0 0.0
    %254 = vmatprep.subr.mxu0 0.0
    %255 = vmatpush1.msra.mxu0 0.0
    %256 = vmatprep.subr.mxu0 0.0
    %257 = vmatpush1.msra.mxu0 0.0
    %258 = vmatprep.subr.mxu0 0.0
    %259 = vmatpush1.msra.mxu0 0.0
    %260 = vmatprep.subr.mxu0 0.0
    %261 = vmatpush1.msra.mxu0 0.0
    %262 = vmatprep.subr.mxu0 0.0
    %263 = vmatpush1.msra.mxu0 0.0
    %264 = vmatprep.subr.mxu0 0.0
    %265 = vmatpush1.msra.mxu0 0.0
    %266 = vmatprep.subr.mxu0 0.0
    %267 = vmatpush1.msra.mxu0 0.0
    %268 = vmatprep.subr.mxu0 0.0
    %269 = vmatpush1.msra.mxu0 0.0
    %270 = vmatprep.subr.mxu0 0.0
    %271 = vmatpush1.msra.mxu0 0.0
    %272 = vmatprep.subr.mxu0 0.0
    %273 = vmatpush1.msra.mxu0 0.0
    %274 = vmatprep.subr.mxu0 0.0
    %275 = vmatpush1.msra.mxu0 0.0
    %276 = vmatprep.subr.mxu0 0.0
    %277 = vmatpush1.msra.mxu0 0.0
    %278 = vmatprep.subr.mxu0 0.0
    %279 = vmatpush1.msra.mxu0 0.0
    %280 = vmatprep.subr.mxu0 0.0
    %281 = vmatpush1.msra.mxu0 0.0
    %282 = vmatprep.subr.mxu0 0.0
    %283 = vmatpush1.msra.mxu0 0.0
    %284 = vmatprep.subr.mxu0 0.0
    %285 = vmatpush1.msra.mxu0 0.0
    %286 = vmatprep.subr.mxu0 0.0
    %287 = vmatpush1.msra.mxu0 0.0
    %288 = vmatprep.subr.mxu0 0.0
    %289 = vmatpush1.msra.mxu0 0.0
    %290 = vmatprep.subr.mxu0 0.0
    %291 = vmatpush1.msra.mxu0 0.0
    %292 = vmatprep.subr.mxu0 0.0
    %293 = vmatpush1.msra.mxu0 0.0
    %294 = vmatprep.subr.mxu0 0.0
    %295 = vmatpush1.msra.mxu0 0.0
    %296 = vmatprep.subr.mxu0 0.0
    %297 = vmatpush1.msra.mxu0 0.0
    %298 = vmatprep.subr.mxu0 0.0
    %299 = vmatpush1.msra.mxu0 0.0
    %300 = vmatprep.mubr.f32.mxu0 0.0
    %301 = vmatmul.mubr.f32.gmra.mrb[0].mxu0 %v234
    %v302 = vpop.f32.mrb[0].mxu0
    %v303 = vadd.f32 %v231, %v302
    %v304 = vpop.f32.mrb[0].mxu0
    %305 = vdwg.mxu0
    %v306 = vmax.f32 %v303, 0.0
    %v307 = vld [vmem:[%s1] sm:$0xff]
    %v308 = vld [vmem:[%s9 + $0x1] sm:$0x1]
    %v309 = vld [vmem:[%s7] sm:$0xff]
    %v310 = vld [vmem:[%s7 + $0x8] sm:$0xff]
    %v311 = vld [vmem:[%s7 + $0x10] sm:$0xff]
    %v312 = vld [vmem:[%s7 + $0x18] sm:$0xff]
    %v313 = vld [vmem:[%s7 + $0x20] sm:$0xff]
    %v314 = vld [vmem:[%s7 + $0x28] sm:$0xff]
    %v315 = vld [vmem:[%s7 + $0x30] sm:$0xff]
    %v316 = vld [vmem:[%s7 + $0x38] sm:$0xff]
    %v317 = vlaneseq
    %v318 = vshrl.u32 %v317, 7
    %v319 = vsub.s32 0, %v318
    %v320 = vrot.slane %v308, %v319
    %v322 = vsel %vm232, %v307, 0
    %324 = vmatprep.subr.mxu0 0.0
    %325 = vmatpush1.msra.mxu0 %v309
    %326 = vmatprep.subr.mxu0 0.0
    %327 = vmatpush1.msra.mxu0 %v310
    %328 = vmatprep.subr.mxu0 0.0
    %329 = vmatpush1.msra.mxu0 %v311
    %330 = vmatprep.subr.mxu0 0.0
    %331 = vmatpush1.msra.mxu0 %v312
    %332 = vmatprep.subr.mxu0 0.0
    %333 = vmatpush1.msra.mxu0 %v313
    %334 = vmatprep.subr.mxu0 0.0
    %335 = vmatpush1.msra.mxu0 %v314
    %336 = vmatprep.subr.mxu0 0.0
    %337 = vmatpush1.msra.mxu0 %v315
    %338 = vmatprep.subr.mxu0 0.0
    %339 = vmatpush1.msra.mxu0 %v316
    %340 = vmatprep.subr.mxu0 0.0
    %341 = vmatpush1.msra.mxu0 0.0
    %342 = vmatprep.subr.mxu0 0.0
    %343 = vmatpush1.msra.mxu0 0.0
    %344 = vmatprep.subr.mxu0 0.0
    %345 = vmatpush1.msra.mxu0 0.0
    %346 = vmatprep.subr.mxu0 0.0
    %347 = vmatpush1.msra.mxu0 0.0
    %348 = vmatprep.subr.mxu0 0.0
    %349 = vmatpush1.msra.mxu0 0.0
    %350 = vmatprep.subr.mxu0 0.0
    %351 = vmatpush1.msra.mxu0 0.0
    %352 = vmatprep.subr.mxu0 0.0
    %353 = vmatpush1.msra.mxu0 0.0
    %354 = vmatprep.subr.mxu0 0.0
    %355 = vmatpush1.msra.mxu0 0.0
    %356 = vmatprep.subr.mxu0 0.0
    %357 = vmatpush1.msra.mxu0 0.0
    %358 = vmatprep.subr.mxu0 0.0
    %359 = vmatpush1.msra.mxu0 0.0
    %360 = vmatprep.subr.mxu0 0.0
    %361 = vmatpush1.msra.mxu0 0.0
    %362 = vmatprep.subr.mxu0 0.0
    %363 = vmatpush1.msra.mxu0 0.0
    %364 = vmatprep.subr.mxu0 0.0
    %365 = vmatpush1.msra.mxu0 0.0
    %366 = vmatprep.subr.mxu0 0.0
    %367 = vmatpush1.msra.mxu0 0.0
    %368 = vmatprep.subr.mxu0 0.0
    %369 = vmatpush1.msra.mxu0 0.0
    %370 = vmatprep.subr.mxu0 0.0
    %371 = vmatpush1.msra.mxu0 0.0
    %372 = vmatprep.subr.mxu0 0.0
    %373 = vmatpush1.msra.mxu0 0.0
    %374 = vmatprep.subr.mxu0 0.0
    %375 = vmatpush1.msra.mxu0 0.0
    %376 = vmatprep.subr.mxu0 0.0
    %377 = vmatpush1.msra.mxu0 0.0
    %378 = vmatprep.subr.mxu0 0.0
    %379 = vmatpush1.msra.mxu0 0.0
    %380 = vmatprep.subr.mxu0 0.0
    %381 = vmatpush1.msra.mxu0 0.0
    %382 = vmatprep.subr.mxu0 0.0
    %383 = vmatpush1.msra.mxu0 0.0
    %384 = vmatprep.subr.mxu0 0.0
    %385 = vmatpush1.msra.mxu0 0.0
    %386 = vmatprep.subr.mxu0 0.0
    %387 = vmatpush1.msra.mxu0 0.0
    %388 = vmatprep.mubr.f32.mxu0 0.0
    %389 = vmatmul.mubr.f32.gmra.mrb[0].mxu0 %v322
    %v390 = vpop.f32.mrb[0].mxu0
    %v391 = vadd.f32 %v320, %v390
    %v392 = vpop.f32.mrb[0].mxu0
    %393 = vdwg.mxu0
    %v394 = vmax.f32 %v391, 0.0
    %v395 = vld [vmem:[%s4] sm:$0xff]
    %v396 = vmul.f32 %v395, %v395
    %v397 = vsel %vm73, %v396, 0.0
    %398 = vadd.xlane.f32.xlu0 %v397
    %v399 = vpop.xlane.xlu0 %398
    %v400 = vrsqrt.pop %v399
    %v401 = vmul.f32 %v399, %v400
    %vm402 = vcmp.eq.f32.partialorder %v399, inf
    %v403 = vsel %vm402, %v399, %v401
    %vm404 = vcmp.eq.f32.partialorder %v399, 0.0
    %v405 = vand.u32 %v399, 2147483648
    %v406 = vsel %vm404, %v405, %v403
    %v407 = vmax.f32 %v406, 1e-12
    %v408 = vrcp.pop %v407
    %v409 = vmul.f32 %v395, %v408
    %410 = vadd.xlane.f32.xlu0 %v88
    %v411 = vpop.xlane.xlu0 %410
    %v412 = vrsqrt.pop %v411
    %v413 = vmul.f32 %v411, %v412
    %vm414 = vcmp.eq.f32.partialorder %v411, inf
    %v415 = vsel %vm414, %v411, %v413
    %vm416 = vcmp.eq.f32.partialorder %v411, 0.0
    %v417 = vand.u32 %v411, 2147483648
    %v418 = vsel %vm416, %v417, %v415
    %v419 = vmax.f32 %v418, 1e-12
    %v420 = vrcp.pop %v419
    %v421 = vmul.f32 %v71, %v420
    %422 = vst [vmem:[#allocation2] sm:$0xff] 0.0
    %423 = vst [vmem:[#allocation2 + $0x8] sm:$0xff] 0.0
    %424 = vst [vmem:[#allocation2 + $0x10] sm:$0xff] 0.0
    %425 = vst [vmem:[#allocation2 + $0x18] sm:$0xff] 0.0
    %426 = vst [vmem:[#allocation2 + $0x20] sm:$0xff] 0.0
    %427 = vst.msk [vmem:[#allocation2] sm:$0xff] %vm73, %v306
    %428 = vst.msk [vmem:[#allocation2 + $0x8] sm:$0xff] %vm73, %v394
    %429 = vst.msk [vmem:[#allocation2 + $0x10] sm:$0xff] %vm73, %v86
    %430 = vst.msk [vmem:[#allocation2 + $0x18] sm:$0xff] %vm73, %v409
    %431 = vst.msk [vmem:[#allocation2 + $0x20] sm:$0xff] %vm73, %v421
    %v432 = vld [vmem:[%s9 + $0x2] sm:$0x1]
    %v433 = vld [vmem:[%s9 + $0x3] sm:$0x1]
    %v434 = vld [vmem:[#allocation2] sm:$0xff]
    %v435 = vld [vmem:[#allocation2 + $0x8] sm:$0xff]
    %v436 = vld [vmem:[#allocation2 + $0x10] sm:$0xff]
    %v437 = vld [vmem:[#allocation2 + $0x18] sm:$0xff]
    %v438 = vld [vmem:[#allocation2 + $0x20] sm:$0xff]
    %v439 = vld [vmem:[#allocation3] sm:$0xff]
    %v440 = vld [vmem:[#allocation3 + $0x8] sm:$0xff]
    %v441 = vld [vmem:[#allocation3 + $0x10] sm:$0xff]
    %v442 = vld [vmem:[#allocation3 + $0x18] sm:$0xff]
    %v443 = vld [vmem:[#allocation3 + $0x20] sm:$0xff]
    %v444 = vld [vmem:[#allocation3 + $0x28] sm:$0xff]
    %v445 = vld [vmem:[#allocation3 + $0x30] sm:$0xff]
    %v446 = vld [vmem:[#allocation3 + $0x38] sm:$0xff]
    %v447 = vld [vmem:[#allocation3 + $0x40] sm:$0xff]
    %v448 = vld [vmem:[#allocation3 + $0x48] sm:$0xff]
    %v449 = vld [vmem:[#allocation3 + $0x50] sm:$0xff]
    %v450 = vld [vmem:[#allocation3 + $0x58] sm:$0xff]
    %v451 = vld [vmem:[#allocation3 + $0x60] sm:$0xff]
    %v452 = vld [vmem:[#allocation3 + $0x68] sm:$0xff]
    %v453 = vld [vmem:[#allocation3 + $0x70] sm:$0xff]
    %v454 = vld [vmem:[#allocation3 + $0x78] sm:$0xff]
    %v455 = vld [vmem:[#allocation3 + $0x80] sm:$0xff]
    %v456 = vld [vmem:[#allocation3 + $0x88] sm:$0xff]
    %v457 = vld [vmem:[#allocation3 + $0x90] sm:$0xff]
    %v458 = vld [vmem:[#allocation3 + $0x98] sm:$0xff]
    %v459 = vld [vmem:[#allocation3 + $0xa0] sm:$0xff]
    %v460 = vld [vmem:[#allocation3 + $0xa8] sm:$0xff]
    %v461 = vld [vmem:[#allocation3 + $0xb0] sm:$0xff]
    %v462 = vld [vmem:[#allocation3 + $0xb8] sm:$0xff]
    %v463 = vld [vmem:[#allocation3 + $0xc0] sm:$0xff]
    %v464 = vld [vmem:[#allocation3 + $0xc8] sm:$0xff]
    %v465 = vld [vmem:[#allocation3 + $0xd0] sm:$0xff]
    %v466 = vld [vmem:[#allocation3 + $0xd8] sm:$0xff]
    %v467 = vld [vmem:[#allocation3 + $0xe0] sm:$0xff]
    %v468 = vld [vmem:[#allocation3 + $0xe8] sm:$0xff]
    %v469 = vld [vmem:[#allocation3 + $0xf0] sm:$0xff]
    %v470 = vld [vmem:[#allocation3 + $0xf8] sm:$0xff]
    %v471 = vld [vmem:[#allocation3 + $0x100] sm:$0xff]
    %v472 = vld [vmem:[#allocation3 + $0x108] sm:$0xff]
    %v473 = vld [vmem:[#allocation3 + $0x110] sm:$0xff]
    %v474 = vld [vmem:[#allocation3 + $0x118] sm:$0xff]
    %v475 = vld [vmem:[#allocation3 + $0x120] sm:$0xff]
    %v476 = vld [vmem:[#allocation3 + $0x128] sm:$0xff]
    %v477 = vld [vmem:[#allocation3 + $0x130] sm:$0xff]
    %v478 = vld [vmem:[#allocation3 + $0x138] sm:$0xff]
    %v479 = vld [vmem:[#allocation3 + $0x140] sm:$0xff]
    %v480 = vld [vmem:[#allocation3 + $0x148] sm:$0xff]
    %v481 = vld [vmem:[#allocation3 + $0x150] sm:$0xff]
    %v482 = vld [vmem:[#allocation3 + $0x158] sm:$0xff]
    %v483 = vld [vmem:[#allocation3 + $0x160] sm:$0xff]
    %v484 = vld [vmem:[#allocation3 + $0x168] sm:$0xff]
    %v485 = vld [vmem:[#allocation3 + $0x170] sm:$0xff]
    %v486 = vld [vmem:[#allocation3 + $0x178] sm:$0xff]
    %v487 = vld [vmem:[#allocation3 + $0x180] sm:$0xff]
    %v488 = vld [vmem:[#allocation3 + $0x188] sm:$0xff]
    %v489 = vld [vmem:[#allocation3 + $0x190] sm:$0xff]
    %v490 = vld [vmem:[#allocation3 + $0x198] sm:$0xff]
    %v491 = vld [vmem:[#allocation3 + $0x1a0] sm:$0xff]
    %v492 = vld [vmem:[#allocation3 + $0x1a8] sm:$0xff]
    %v493 = vld [vmem:[#allocation3 + $0x1b0] sm:$0xff]
    %v494 = vld [vmem:[#allocation3 + $0x1b8] sm:$0xff]
    %v495 = vld [vmem:[#allocation3 + $0x1c0] sm:$0xff]
    %v496 = vld [vmem:[#allocation3 + $0x1c8] sm:$0xff]
    %v497 = vld [vmem:[#allocation3 + $0x1d0] sm:$0xff]
    %v498 = vld [vmem:[#allocation3 + $0x1d8] sm:$0xff]
    %v499 = vld [vmem:[#allocation3 + $0x1e0] sm:$0xff]
    %v500 = vld [vmem:[#allocation3 + $0x1e8] sm:$0xff]
    %v501 = vld [vmem:[#allocation3 + $0x1f0] sm:$0xff]
    %v502 = vld [vmem:[#allocation3 + $0x1f8] sm:$0xff]
    %v503 = vld [vmem:[#allocation3 + $0x200] sm:$0xff]
    %v504 = vld [vmem:[#allocation3 + $0x208] sm:$0xff]
    %v505 = vld [vmem:[#allocation3 + $0x210] sm:$0xff]
    %v506 = vld [vmem:[#allocation3 + $0x218] sm:$0xff]
    %v507 = vld [vmem:[#allocation3 + $0x220] sm:$0xff]
    %v508 = vld [vmem:[#allocation3 + $0x228] sm:$0xff]
    %v509 = vld [vmem:[#allocation3 + $0x230] sm:$0xff]
    %v510 = vld [vmem:[#allocation3 + $0x238] sm:$0xff]
    %v511 = vld [vmem:[#allocation3 + $0x240] sm:$0xff]
    %v512 = vld [vmem:[#allocation3 + $0x248] sm:$0xff]
    %v513 = vld [vmem:[#allocation3 + $0x250] sm:$0xff]
    %v514 = vld [vmem:[#allocation3 + $0x258] sm:$0xff]
    %v515 = vld [vmem:[#allocation3 + $0x260] sm:$0xff]
    %v516 = vld [vmem:[#allocation3 + $0x268] sm:$0xff]
    %v517 = vld [vmem:[#allocation3 + $0x270] sm:$0xff]
    %v518 = vld [vmem:[#allocation3 + $0x278] sm:$0xff]
    %v519 = vlaneseq
    %v520 = vshrl.u32 %v519, 7
    %v521 = vsub.s32 0, %v520
    %v522 = vrot.slane %v432, %v521
    %523 = vmatprep.subr.mxu0 0.0
    %524 = vmatpush1.msra.mxu0 %v439
    %525 = vmatprep.subr.mxu0 0.0
    %526 = vmatpush1.msra.mxu0 %v440
    %527 = vmatprep.subr.mxu0 0.0
    %528 = vmatpush1.msra.mxu0 %v441
    %529 = vmatprep.subr.mxu0 0.0
    %530 = vmatpush1.msra.mxu0 %v442
    %531 = vmatprep.subr.mxu0 0.0
    %532 = vmatpush1.msra.mxu0 %v443
    %533 = vmatprep.subr.mxu0 0.0
    %534 = vmatpush1.msra.mxu0 %v444
    %535 = vmatprep.subr.mxu0 0.0
    %536 = vmatpush1.msra.mxu0 %v445
    %537 = vmatprep.subr.mxu0 0.0
    %538 = vmatpush1.msra.mxu0 %v446
    %539 = vmatprep.subr.mxu0 0.0
    %540 = vmatpush1.msra.mxu0 %v447
    %541 = vmatprep.subr.mxu0 0.0
    %542 = vmatpush1.msra.mxu0 %v448
    %543 = vmatprep.subr.mxu0 0.0
    %544 = vmatpush1.msra.mxu0 %v449
    %545 = vmatprep.subr.mxu0 0.0
    %546 = vmatpush1.msra.mxu0 %v450
    %547 = vmatprep.subr.mxu0 0.0
    %548 = vmatpush1.msra.mxu0 %v451
    %549 = vmatprep.subr.mxu0 0.0
    %550 = vmatpush1.msra.mxu0 %v452
    %551 = vmatprep.subr.mxu0 0.0
    %552 = vmatpush1.msra.mxu0 %v453
    %553 = vmatprep.subr.mxu0 0.0
    %554 = vmatpush1.msra.mxu0 %v454
    %555 = vmatprep.subr.mxu0 0.0
    %556 = vmatpush1.msra.mxu0 %v455
    %557 = vmatprep.subr.mxu0 0.0
    %558 = vmatpush1.msra.mxu0 %v456
    %559 = vmatprep.subr.mxu0 0.0
    %560 = vmatpush1.msra.mxu0 %v457
    %561 = vmatprep.subr.mxu0 0.0
    %562 = vmatpush1.msra.mxu0 %v458
    %563 = vmatprep.subr.mxu0 0.0
    %564 = vmatpush1.msra.mxu0 %v459
    %565 = vmatprep.subr.mxu0 0.0
    %566 = vmatpush1.msra.mxu0 %v460
    %567 = vmatprep.subr.mxu0 0.0
    %568 = vmatpush1.msra.mxu0 %v461
    %569 = vmatprep.subr.mxu0 0.0
    %570 = vmatpush1.msra.mxu0 %v462
    %571 = vmatprep.subr.mxu0 0.0
    %572 = vmatpush1.msra.mxu0 %v463
    %573 = vmatprep.subr.mxu0 0.0
    %574 = vmatpush1.msra.mxu0 %v464
    %575 = vmatprep.subr.mxu0 0.0
    %576 = vmatpush1.msra.mxu0 %v465
    %577 = vmatprep.subr.mxu0 0.0
    %578 = vmatpush1.msra.mxu0 %v466
    %579 = vmatprep.subr.mxu0 0.0
    %580 = vmatpush1.msra.mxu0 %v467
    %581 = vmatprep.subr.mxu0 0.0
    %582 = vmatpush1.msra.mxu0 %v468
    %583 = vmatprep.subr.mxu0 0.0
    %584 = vmatpush1.msra.mxu0 %v469
    %585 = vmatprep.subr.mxu0 0.0
    %586 = vmatpush1.msra.mxu0 %v470
    %587 = vmatprep.mubr.f32.mxu0 %v435
    %588 = vmatmul.mubr.f32.gmra.mrb[0].mxu0 %v434
    %v589 = vpop.f32.mrb[0].mxu0
    %v590 = vadd.f32 %v522, %v589
    %v591 = vpop.f32.mrb[0].mxu0
    %592 = vdwg.mxu0
    %593 = vmatprep.subr.mxu0 0.0
    %594 = vmatpush1.msra.mxu0 %v471
    %595 = vmatprep.subr.mxu0 0.0
    %596 = vmatpush1.msra.mxu0 %v472
    %597 = vmatprep.subr.mxu0 0.0
    %598 = vmatpush1.msra.mxu0 %v473
    %599 = vmatprep.subr.mxu0 0.0
    %600 = vmatpush1.msra.mxu0 %v474
    %601 = vmatprep.subr.mxu0 0.0
    %602 = vmatpush1.msra.mxu0 %v475
    %603 = vmatprep.subr.mxu0 0.0
    %604 = vmatpush1.msra.mxu0 %v476
    %605 = vmatprep.subr.mxu0 0.0
    %606 = vmatpush1.msra.mxu0 %v477
    %607 = vmatprep.subr.mxu0 0.0
    %608 = vmatpush1.msra.mxu0 %v478
    %609 = vmatprep.subr.mxu0 0.0
    %610 = vmatpush1.msra.mxu0 %v479
    %611 = vmatprep.subr.mxu0 0.0
    %612 = vmatpush1.msra.mxu0 %v480
    %613 = vmatprep.subr.mxu0 0.0
    %614 = vmatpush1.msra.mxu0 %v481
    %615 = vmatprep.subr.mxu0 0.0
    %616 = vmatpush1.msra.mxu0 %v482
    %617 = vmatprep.subr.mxu0 0.0
    %618 = vmatpush1.msra.mxu0 %v483
    %619 = vmatprep.subr.mxu0 0.0
    %620 = vmatpush1.msra.mxu0 %v484
    %621 = vmatprep.subr.mxu0 0.0
    %622 = vmatpush1.msra.mxu0 %v485
    %623 = vmatprep.subr.mxu0 0.0
    %624 = vmatpush1.msra.mxu0 %v486
    %625 = vmatprep.subr.mxu0 0.0
    %626 = vmatpush1.msra.mxu0 %v487
    %627 = vmatprep.subr.mxu0 0.0
    %628 = vmatpush1.msra.mxu0 %v488
    %629 = vmatprep.subr.mxu0 0.0
    %630 = vmatpush1.msra.mxu0 %v489
    %631 = vmatprep.subr.mxu0 0.0
    %632 = vmatpush1.msra.mxu0 %v490
    %633 = vmatprep.subr.mxu0 0.0
    %634 = vmatpush1.msra.mxu0 %v491
    %635 = vmatprep.subr.mxu0 0.0
    %636 = vmatpush1.msra.mxu0 %v492
    %637 = vmatprep.subr.mxu0 0.0
    %638 = vmatpush1.msra.mxu0 %v493
    %639 = vmatprep.subr.mxu0 0.0
    %640 = vmatpush1.msra.mxu0 %v494
    %641 = vmatprep.subr.mxu0 0.0
    %642 = vmatpush1.msra.mxu0 %v495
    %643 = vmatprep.subr.mxu0 0.0
    %644 = vmatpush1.msra.mxu0 %v496
    %645 = vmatprep.subr.mxu0 0.0
    %646 = vmatpush1.msra.mxu0 %v497
    %647 = vmatprep.subr.mxu0 0.0
    %648 = vmatpush1.msra.mxu0 %v498
    %649 = vmatprep.subr.mxu0 0.0
    %650 = vmatpush1.msra.mxu0 %v499
    %651 = vmatprep.subr.mxu0 0.0
    %652 = vmatpush1.msra.mxu0 %v500
    %653 = vmatprep.subr.mxu0 0.0
    %654 = vmatpush1.msra.mxu0 %v501
    %655 = vmatprep.subr.mxu0 0.0
    %656 = vmatpush1.msra.mxu0 %v502
    %657 = vmatprep.mubr.f32.mxu0 %v437
    %658 = vmatmul.mubr.f32.gmra.mrb[0].mxu0 %v436
    %v659 = vpop.f32.mrb[0].mxu0
    %v660 = vadd.f32 %v590, %v659
    %v661 = vpop.f32.mrb[0].mxu0
    %662 = vdwg.mxu0
    %663 = vmatprep.subr.mxu0 0.0
    %664 = vmatpush1.msra.mxu0 %v503
    %665 = vmatprep.subr.mxu0 0.0
    %666 = vmatpush1.msra.mxu0 %v504
    %667 = vmatprep.subr.mxu0 0.0
    %668 = vmatpush1.msra.mxu0 %v505
    %669 = vmatprep.subr.mxu0 0.0
    %670 = vmatpush1.msra.mxu0 %v506
    %671 = vmatprep.subr.mxu0 0.0
    %672 = vmatpush1.msra.mxu0 %v507
    %673 = vmatprep.subr.mxu0 0.0
    %674 = vmatpush1.msra.mxu0 %v508
    %675 = vmatprep.subr.mxu0 0.0
    %676 = vmatpush1.msra.mxu0 %v509
    %677 = vmatprep.subr.mxu0 0.0
    %678 = vmatpush1.msra.mxu0 %v510
    %679 = vmatprep.subr.mxu0 0.0
    %680 = vmatpush1.msra.mxu0 %v511
    %681 = vmatprep.subr.mxu0 0.0
    %682 = vmatpush1.msra.mxu0 %v512
    %683 = vmatprep.subr.mxu0 0.0
    %684 = vmatpush1.msra.mxu0 %v513
    %685 = vmatprep.subr.mxu0 0.0
    %686 = vmatpush1.msra.mxu0 %v514
    %687 = vmatprep.subr.mxu0 0.0
    %688 = vmatpush1.msra.mxu0 %v515
    %689 = vmatprep.subr.mxu0 0.0
    %690 = vmatpush1.msra.mxu0 %v516
    %691 = vmatprep.subr.mxu0 0.0
    %692 = vmatpush1.msra.mxu0 %v517
    %693 = vmatprep.subr.mxu0 0.0
    %694 = vmatpush1.msra.mxu0 %v518
    %695 = vmatprep.subr.mxu0 0.0
    %696 = vmatpush1.msra.mxu0 0.0
    %697 = vmatprep.subr.mxu0 0.0
    %698 = vmatpush1.msra.mxu0 0.0
    %699 = vmatprep.subr.mxu0 0.0
    %700 = vmatpush1.msra.mxu0 0.0
    %701 = vmatprep.subr.mxu0 0.0
    %702 = vmatpush1.msra.mxu0 0.0
    %703 = vmatprep.subr.mxu0 0.0
    %704 = vmatpush1.msra.mxu0 0.0
    %705 = vmatprep.subr.mxu0 0.0
    %706 = vmatpush1.msra.mxu0 0.0
    %707 = vmatprep.subr.mxu0 0.0
    %708 = vmatpush1.msra.mxu0 0.0
    %709 = vmatprep.subr.mxu0 0.0
    %710 = vmatpush1.msra.mxu0 0.0
    %711 = vmatprep.subr.mxu0 0.0
    %712 = vmatpush1.msra.mxu0 0.0
    %713 = vmatprep.subr.mxu0 0.0
    %714 = vmatpush1.msra.mxu0 0.0
    %715 = vmatprep.subr.mxu0 0.0
    %716 = vmatpush1.msra.mxu0 0.0
    %717 = vmatprep.subr.mxu0 0.0
    %718 = vmatpush1.msra.mxu0 0.0
    %719 = vmatprep.subr.mxu0 0.0
    %720 = vmatpush1.msra.mxu0 0.0
    %721 = vmatprep.subr.mxu0 0.0
    %722 = vmatpush1.msra.mxu0 0.0
    %723 = vmatprep.subr.mxu0 0.0
    %724 = vmatpush1.msra.mxu0 0.0
    %725 = vmatprep.subr.mxu0 0.0
    %726 = vmatpush1.msra.mxu0 0.0
    %727 = vmatprep.mubr.f32.mxu0 0.0
    %728 = vmatmul.mubr.f32.gmra.mrb[0].mxu0 %v438
    %v729 = vpop.f32.mrb[0].mxu0
    %v730 = vadd.f32 %v660, %v729
    %v731 = vpop.f32.mrb[0].mxu0
    %732 = vdwg.mxu0
    %v733 = vmax.f32 %v730, 0.0
    %v734 = vlaneseq
    %v735 = vshrl.u32 %v734, 7
    %v736 = vsub.s32 0, %v735
    %v737 = vrot.slane %v433, %v736
    %v738 = vmul.f32 %v733, %v737
    %739 = vadd.xlane.f32.xlu0 %v738
    %v740 = vpop.xlane.xlu0 %739
    %v741 = vstv %s69
    %v742 = vadd.f32 %v740, %v741
    %v743 = vxor.u32 %v742, 2147483648
    %v744 = vmul.f32 %v743, 1.442695
    %v745 = vpow.pop %v744
    %v746 = vadd.f32 %v745, 1.0
    %v747 = vrcp.pop %v746
    %v748 = vmul.f32 1.0, %v747
    %vm749 = vcmask 7168
    %750 = vst.msk [vmem:[%s11] sm:$0xff] %vm749, %v748
    %v751 = vld [vmem:[%s2] sm:$0xff]
    %v752 = vlog2.pop %v748
    %v753 = vmul.f32 %v752, 0.6931472
    %v754 = vmax.f32 %v753, -100.0
    %v755 = vsub.f32 1.0, %v748
    %v756 = vlog2.pop %v755
    %v757 = vmul.f32 %v756, 0.6931472
    %v758 = vmax.f32 %v757, -100.0
    %v759 = vmul.f32 %v751, %v754
    %v760 = vsub.f32 1.0, %v751
    %v761 = vmul.f32 %v760, %v758
    %v762 = vadd.f32 %v759, %v761
    %v763 = vsub.f32 0.0, %v762
    %v764 = vsel %vm749, %v763, 0.0
    %v765 = vrot.slane %v764, 4
    %v766 = vadd.f32 %v764, %v765
    %v767 = vrot.slane %v766, 2
    %v768 = vadd.f32 %v766, %v767
    %v769 = vrot.slane %v768, 1
    %v770 = vadd.f32 %v768, %v769
    %v771 = vrcp.pop 8.0
    %v772 = vmul.f32 %v770, %v771
    %v773 = vstv %s68
    %v774 = vmul.f32 %v773, %v217
    %v775 = vadd.f32 %v772, %v774
    %vm776 = vcmask 0
    %777 = vst.msk [vmem:[#allocation8] sm:$0x1] %vm776, %v775
    // Predicated region
    $region54: #{graph_classifier_forward.1} parent=1 // pred_check
      _
    $region55: #{graph_classifier_forward.1} parent=1 // pred_check_branch
      %779 = sbr.rel (0) target = $region57
    $region56: #{graph_classifier_forward.1} parent=1 // pred_region
      _
    $region57: #{graph_classifier_forward.1} parent=1 // pred_fallthru
      _
    // Predicated region
    $region58: #{graph_classifier_forward.1} parent=1 // pred_check
      _
    $region59: #{graph_classifier_forward.1} parent=1 // pred_check_branch
      %781 = sbr.rel (0) target = $region61
    $region60: #{graph_classifier_forward.1} parent=1 // pred_region
      %s783 = ssub.s32 16, 16
      %784 = vsyncadd [#allocation5], %s783
      %s786 = sshll.u32 [#allocation8], 4
      %s787 = int_to_ptr.vmem [resolvable:$true] %s786
      %789 = dma.vmem_to_hbm [thread:$0]  %s787, 16, %s12, [#allocation5]
    $region61: #{graph_classifier_forward.1} parent=1 // pred_fallthru
      _
    // Predicated region
    $region62: #{graph_classifier_forward.1} parent=1 // pred_check
      _
    $region63: #{graph_classifier_forward.1} parent=1 // pred_check_branch
      %791 = sbr.rel (0) target = $region65
    $region64: #{graph_classifier_forward.1} parent=1 // pred_region
      _
    $region65: #{graph_classifier_forward.1} parent=1 // pred_fallthru
      _
    // Predicated region
    $region66: #{graph_classifier_forward.1} parent=1 // pred_check
      _
    $region67: #{graph_classifier_forward.1} parent=1 // pred_check_branch
      %793 = sbr.rel (0) target = $region69
    $region68: #{graph_classifier_forward.1} parent=1 // pred_region
      %794 = dma.done [#allocation5], 16
    $region69: #{graph_classifier_forward.1} parent=1 // pred_fallthru
      _
    %795 = vsyncpa [#allocation4], 1
    %796 = vsyncpa [#allocation5], 1
    %797 = vsyncpa [#allocation6], 1

</llo_original>
